<compile_context>
chip_gen: v7x
topology: tpu7x:2x2x1
jax: 0.10.0
libtpu: 0.0.40
codegen_flags: <defaults>
</compile_context>

<pallas_src>
import math
from typing import Dict, List, Tuple

import jax
import jax.numpy as jnp
from jax.experimental import pallas as pl
from jax.experimental.pallas import tpu as pltpu


# ---------------------------------------------------------------------------
# Pallas kernel (hot path: VPU multiply + thin MXU segment-sum + sigmoid)
# ---------------------------------------------------------------------------
def _dot_score_kernel(src_ref, dst_ref, s_ref, out_ref):
    # src/dst blocks: [tile_t, pack*D] bf16 (pack edges packed along lanes).
    # s_ref: [pack*D, pack] bf16 kron(I_pack, ones(D,1)) -> per-edge <src, dst>,
    # accumulated in f32 on the MXU.
    prod = src_ref[...] * dst_ref[...]
    raw = jnp.dot(prod, s_ref[...], preferred_element_type=jnp.float32)
    out_ref[...] = jax.nn.sigmoid(raw)


# ---------------------------------------------------------------------------
# Wrapper around pallas_call
# ---------------------------------------------------------------------------
_SUBLANE = 16                      # bf16 sublane packing
_TARGET_BLOCK_BYTES = 2 << 20      # 2 MiB per input block: 2 in x 2 buf = 8 MiB VMEM


def _round_up(x: int, m: int) -> int:
    return ((x + m - 1) // m) * m


def _cdiv(a: int, b: int) -> int:
    return -(-a // b)


def _choose_pack(d: int) -> int:
    for lanes in (256, 128):
        if d <= lanes and lanes % d == 0:
            return lanes // d
    return 1


def packed_edge_scores(src_parts: List[jax.Array], dst_parts: List[jax.Array]) -> jax.Array:
    """Per-edge sigmoid(<src, dst>) for concatenated bf16 edge features.

    src_parts / dst_parts: lists of [e_i, D] bf16 arrays (already gathered onto
    edges, with any bilinear weight pre-folded into src). Returns [sum(e_i)] f32.
    """
    e = sum(int(p.shape[0]) for p in src_parts)
    if e == 0:
        return jnp.zeros((0,), jnp.float32)
    d = int(src_parts[0].shape[1])

    pack = _choose_pack(d)
    f = pack * d                                   # lanes per packed row

    # Tile sizing: ~2 MiB per input block, rounded to bf16 sublane packing.
    t_needed = _cdiv(e, pack)
    target_t = max(_SUBLANE, (_TARGET_BLOCK_BYTES // (f * 2)) // _SUBLANE * _SUBLANE)
    if t_needed > target_t:
        tile_t = target_t
    elif t_needed > _SUBLANE:
        # Keep >= 2 balanced grid steps so the v7x megacore can split the axis.
        tile_t = _round_up(_cdiv(t_needed, 2), _SUBLANE)
    else:
        tile_t = _round_up(t_needed, _SUBLANE)
    grid_n = _cdiv(t_needed, tile_t)
    t_pad = grid_n * tile_t
    e_pad = t_pad * pack

    # Single concatenate builds the padded packed edge array directly (padding is
    # a zero block appended to the concat list -> no separate pad pass, no NaNs).
    # TODO(synk): fuse the edge gather itself into the kernel (scalar-prefetched
    # ids + manual DMA gather from pl.ANY node tables) to drop one HBM round trip.
    if e_pad != e:
        pad = jnp.zeros((e_pad - e, d), jnp.bfloat16)
        src_parts = list(src_parts) + [pad]
        dst_parts = list(dst_parts) + [pad]
    src_pk = jnp.concatenate(src_parts, axis=0).reshape(t_pad, f)
    dst_pk = jnp.concatenate(dst_parts, axis=0).reshape(t_pad, f)

    # Segment-sum matrix kron(I_pack, ones(D,1)): reduces each D-lane segment.
    s_mat = jnp.kron(jnp.eye(pack, dtype=jnp.bfloat16),
                     jnp.ones((d, 1), jnp.bfloat16))           # [f, pack]

    edge_spec = pl.BlockSpec((tile_t, f), lambda i: (i, 0))
    fn = pl.pallas_call(
        _dot_score_kernel,
        out_shape=jax.ShapeDtypeStruct((t_pad, pack), jnp.float32),
        grid_spec=pltpu.PrefetchScalarGridSpec(
            num_scalar_prefetch=0,
            grid=(grid_n,),
            in_specs=[edge_spec, edge_spec,
                      pl.BlockSpec((f, pack), lambda i: (0, 0))],
            out_specs=pl.BlockSpec((tile_t, pack), lambda i: (i, 0)),
        ),
        compiler_params=pltpu.CompilerParams(dimension_semantics=("parallel",)),
    )
    out = fn(src_pk, dst_pk, s_mat)
    return out.reshape(e_pad)[:e]


def edge_scores(src_table, src_ids, dst_table, dst_ids, weight=None):
    """Standalone single-etype scorer: sigmoid(src @ (W @) dst) per edge."""
    if int(src_ids.shape[0]) == 0:
        return jnp.zeros((0,), jnp.float32)
    if weight is not None:
        # Fold W into the node table (f32 matmul) before the bf16 gather.
        src_table = src_table.astype(jnp.float32) @ weight.astype(jnp.float32)
    src_x = jnp.take(src_table.astype(jnp.bfloat16), src_ids, axis=0)
    dst_x = jnp.take(dst_table.astype(jnp.bfloat16), dst_ids, axis=0)
    return packed_edge_scores([src_x], [dst_x])


# ---------------------------------------------------------------------------
# ScorePredictor module (graph bookkeeping is plain-JAX glue)
# ---------------------------------------------------------------------------
class ScorePredictor:
    """Link-prediction decoder. Graph is represented as
    {canonical_etype: (src_ids, dst_ids)} instead of a DGLHeteroGraph."""

    def __init__(self, canonical_edge_types: List[Tuple[str, str, str]],
                 out_dim: int, key: jax.Array):
        # xavier_uniform_ with gain = calculate_gain('relu') = sqrt(2)
        gain = math.sqrt(2.0)
        bound = gain * math.sqrt(6.0 / (out_dim + out_dim))
        self.weights_edges: Dict[str, jax.Array] = {}
        for i, et in enumerate(canonical_edge_types):
            k = jax.random.fold_in(key, i)
            self.weights_edges[str(et)] = jax.random.uniform(
                k, (out_dim, out_dim), jnp.float32, -bound, bound)

    def __call__(self,
                 edge_subgraph: Dict[Tuple[str, str, str], Tuple[jax.Array, jax.Array]],
                 node_feature_tensor: Dict[str, jax.Array],
                 use_edge_weight: bool = False):
        # Cast each node table to bf16 once (shared across etypes on the dot path).
        bf16_tables = {k: v.astype(jnp.bfloat16) for k, v in node_feature_tensor.items()}

        src_parts, dst_parts, order = [], [], []
        for canonical_etype, (src_ids, dst_ids) in edge_subgraph.items():
            srctype, _etype, dsttype = canonical_etype
            if srctype not in node_feature_tensor or dsttype not in node_feature_tensor:
                continue
            n_e = int(src_ids.shape[0])
            if n_e <= 0:
                continue
            if use_edge_weight:
                w = self.weights_edges[str(canonical_etype)]
                src_tab = (node_feature_tensor[srctype].astype(jnp.float32)
                           @ w).astype(jnp.bfloat16)
            else:
                src_tab = bf16_tables[srctype]
            src_parts.append(jnp.take(src_tab, src_ids, axis=0))
            dst_parts.append(jnp.take(bf16_tables[dsttype], dst_ids, axis=0))
            order.append((canonical_etype, n_e))

        if not order:
            return {}

        # One fused pallas_call for all edge types (W already folded per etype).
        scores = packed_edge_scores(src_parts, dst_parts)

        result_dict, off = {}, 0
        for canonical_etype, n_e in order:
            result_dict[canonical_etype] = scores[off:off + n_e]
            off += n_e
        return result_dict


# ---------------------------------------------------------------------------
# Demo / correctness check
# ---------------------------------------------------------------------------
if __name__ == "__main__":
    key = jax.random.PRNGKey(0)
    out_dim = 32
    n_drug, n_disease = 6, 5

    canonical_edge_types = [
        ("drug", "treats", "disease"),
        ("drug", "interacts", "drug"),
        ("drug", "causes", "sideeffect"),   # missing node type -> skipped
        ("disease", "empty", "drug"),       # zero edges -> skipped
    ]

    k_feat_d, k_feat_s, k_e1s, k_e1d, k_e2s, k_e2d, k_w = jax.random.split(key, 7)
    node_features = {
        "drug": jax.random.normal(k_feat_d, (n_drug, out_dim), jnp.float32),
        "disease": jax.random.normal(k_feat_s, (n_disease, out_dim), jnp.float32),
    }
    edge_subgraph = {
        ("drug", "treats", "disease"): (
            jax.random.randint(k_e1s, (7,), 0, n_drug),
            jax.random.randint(k_e1d, (7,), 0, n_disease)),
        ("drug", "interacts", "drug"): (
            jax.random.randint(k_e2s, (9,), 0, n_drug),
            jax.random.randint(k_e2d, (9,), 0, n_drug)),
        ("drug", "causes", "sideeffect"): (
            jnp.zeros((3,), jnp.int32), jnp.zeros((3,), jnp.int32)),
        ("disease", "empty", "drug"): (
            jnp.zeros((0,), jnp.int32), jnp.zeros((0,), jnp.int32)),
    }

    model = ScorePredictor(canonical_edge_types, out_dim, k_w)

    # u_dot_v path and bilinear path
    scores_dot = model(edge_subgraph, node_features, use_edge_weight=False)
    scores_bil = model(edge_subgraph, node_features, use_edge_weight=True)
    jax.block_until_ready(scores_dot)
    jax.block_until_ready(scores_bil)

    for et, (sids, dids) in edge_subgraph.items():
        st, _, dt = et
        if st not in node_features or dt not in node_features or sids.shape[0] == 0:
            assert et not in scores_dot and et not in scores_bil
            continue
        sx = node_features[st][sids]
        dx = node_features[dt][dids]
        W = model.weights_edges[str(et)]

        # Full-f32 reference (module semantics); loose tol because the kernel
        # streams bf16 features.
        ref_dot = jax.nn.sigmoid(jnp.sum(sx * dx, axis=-1))
        ref_bil = jax.nn.sigmoid(jnp.einsum("bn,nm,bm->b", sx, W, dx))
        assert jnp.allclose(scores_dot[et], ref_dot, atol=5e-2), et
        assert jnp.allclose(scores_bil[et], ref_bil, atol=5e-2), et

        # bf16-matched reference (same quantization points as the kernel); tight tol.
        sxb = node_features[st].astype(jnp.bfloat16)[sids]
        dxb = node_features[dt].astype(jnp.bfloat16)[dids]
        ref_dot_q = jax.nn.sigmoid(jnp.sum((sxb * dxb).astype(jnp.float32), axis=-1))
        srcw_b = (node_features[st].astype(jnp.float32) @ W).astype(jnp.bfloat16)[sids]
        ref_bil_q = jax.nn.sigmoid(jnp.sum((srcw_b * dxb).astype(jnp.float32), axis=-1))
        assert jnp.allclose(scores_dot[et], ref_dot_q, atol=2e-3), et
        assert jnp.allclose(scores_bil[et], ref_bil_q, atol=2e-3), et

        assert scores_dot[et].dtype == jnp.float32
        assert scores_dot[et].shape == (sids.shape[0],)
        assert scores_bil[et].shape == (sids.shape[0],)

    print("KERNEL_OK")
</pallas_src>

<mosaic_0001>
module attributes {stable_mosaic.version = 11 : i64} {
  func.func @_dot_score_kernel(%arg0: i32, %arg1: memref<16x256xbf16, #tpu.memory_space<vmem>>, %arg2: memref<16x256xbf16, #tpu.memory_space<vmem>>, %arg3: memref<256x8xbf16, #tpu.memory_space<vmem>>, %arg4: memref<16x8xf32, #tpu.memory_space<vmem>>) attributes {dimension_semantics = [#tpu.dimension_semantics<parallel>], iteration_bounds = array<i64: 1>, scalar_prefetch = 0 : i64, scratch_operands = 0 : i64, tpu.core_type = #tpu.core_type<tc>, window_params = [{transform_indices = @transform_0, window_bounds = array<i64: 16, 256>}, {transform_indices = @transform_1, window_bounds = array<i64: 16, 256>}, {pipeline_mode = #tpu.pipeline_mode<synchronous>, transform_indices = @transform_2, window_bounds = array<i64: 256, 8>}, {transform_indices = @transform_3, window_bounds = array<i64: 16, 8>}]} {
    %c0 = arith.constant 0 : index
    %c0_0 = arith.constant 0 : index
    %0 = vector.load %arg1[%c0, %c0_0] : memref<16x256xbf16, #tpu.memory_space<vmem>>, vector<16x256xbf16>
    %c0_1 = arith.constant 0 : index
    %c0_2 = arith.constant 0 : index
    %1 = vector.load %arg2[%c0_1, %c0_2] : memref<16x256xbf16, #tpu.memory_space<vmem>>, vector<16x256xbf16>
    %2 = arith.mulf %0, %1 : vector<16x256xbf16>
    %c0_3 = arith.constant 0 : index
    %c0_4 = arith.constant 0 : index
    %3 = vector.load %arg3[%c0_3, %c0_4] : memref<256x8xbf16, #tpu.memory_space<vmem>>, vector<256x8xbf16>
    %cst = arith.constant dense<0.000000e+00> : vector<16x8xf32>
    %4 = tpu.matmul %2, %3, %cst {dimension_numbers = #tpu.dot_dimension_numbers<[1], [0], [0], [1], [0, 0, 1, 1], [], []>} : vector<16x256xbf16>, vector<256x8xbf16>, vector<16x8xf32> -> vector<16x8xf32>
    %5 = arith.negf %4 : vector<16x8xf32>
    %6 = math.exp %5 : vector<16x8xf32>
    %cst_5 = arith.constant 1.000000e+00 : f32
    %7 = vector.broadcast %cst_5 : f32 to vector<16x8xf32>
    %8 = arith.addf %7, %6 : vector<16x8xf32>
    %9 = arith.divf %7, %8 : vector<16x8xf32>
    %c0_6 = arith.constant 0 : index
    %c0_7 = arith.constant 0 : index
    %10 = vector.load %arg4[%c0_6, %c0_7] : memref<16x8xf32, #tpu.memory_space<vmem>>, vector<16x8xf32>
    tpu.vector_store %arg4[%c0_6, %c0_7], %9 {strides = array<i32>} : memref<16x8xf32, #tpu.memory_space<vmem>>, vector<16x8xf32>,
    return
  }
  func.func @transform_0(%arg0: i32) -> (i32, i32) {
    %c0_i32 = arith.constant 0 : i32
    %c0_i32_0 = arith.constant 0 : i32
    return %arg0, %c0_i32 : i32, i32
  }
  func.func @transform_1(%arg0: i32) -> (i32, i32) {
    %c0_i32 = arith.constant 0 : i32
    %c0_i32_0 = arith.constant 0 : i32
    return %arg0, %c0_i32 : i32, i32
  }
  func.func @transform_2(%arg0: i32) -> (i32, i32) {
    %c0_i32 = arith.constant 0 : i32
    %c0_i32_0 = arith.constant 0 : i32
    %c0_i32_1 = arith.constant 0 : i32
    return %c0_i32, %c0_i32_0 : i32, i32
  }
  func.func @transform_3(%arg0: i32) -> (i32, i32) {
    %c0_i32 = arith.constant 0 : i32
    %c0_i32_0 = arith.constant 0 : i32
    return %arg0, %c0_i32 : i32, i32
  }
}

</mosaic_0001>

<llo_original>
// kernel: tpu_custom_call.1
$region0: #{tpu_custom_call.1}
  #allocation0 [shape = 'u32[]', space=smem, size = 0x4, offset = 0x4, fixed_abs, tag = 'smem constant byte address 0x4 - core index']
  #allocation1 [shape = 'u32[144,128]{1,0:T(1,128)}', space=vmem, size = 0x12000, scoped, tag = 'internal scratch']
  %s0 = inlined_call_operand.vmem [shape: bf16[16,256], index: 0, kind: input, shape index: {}]
  %s1 = inlined_call_operand.vmem [shape: bf16[16,256], index: 1, kind: input, shape index: {}]
  %s2 = inlined_call_operand.vmem [shape: bf16[256,8], index: 2, kind: input, shape index: {}]
  %s3 = inlined_call_operand.vmem [shape: f32[16,8], index: 3, kind: output, shape index: {}]
  %s4 = sld [smem:[#allocation0]]
  $region22: #{tpu_custom_call.1} parent=0
    _
  %s6 = ssub.s32 1, %s4
  %s7 = scalar_select 0, %s6, %s4
  // Predicated region
  $region2: #{tpu_custom_call.1} parent=0 // pred_check
    _
  $region3: #{tpu_custom_call.1} parent=0 // pred_check_branch
    %9 = sbr.rel (0) target = $region5
  $region4: #{tpu_custom_call.1} parent=0 // pred_region
    _
  $region5: #{tpu_custom_call.1} parent=0 // pred_fallthru
    _
  // Predicated region
  $region6: #{tpu_custom_call.1} parent=0 // pred_check
    _
  $region7: #{tpu_custom_call.1} parent=0 // pred_check_branch
    %11 = sbr.rel (0) target = $region9
  $region8: #{tpu_custom_call.1} parent=0 // pred_region
    _
  $region9: #{tpu_custom_call.1} parent=0 // pred_fallthru
    _
  // Predicated region
  $region10: #{tpu_custom_call.1} parent=0 // pred_check
    _
  $region11: #{tpu_custom_call.1} parent=0 // pred_check_branch
    %13 = sbr.rel (0) target = $region13
  $region12: #{tpu_custom_call.1} parent=0 // pred_region
    _
  $region13: #{tpu_custom_call.1} parent=0 // pred_fallthru
    _
  %v15 = vld [vmem:[%s0] sm:$0xff]
  %v16 = vld [vmem:[%s0 + $0x8] sm:$0xff]
  %v17 = vld [vmem:[%s1] sm:$0xff]
  %v18 = vld [vmem:[%s1 + $0x8] sm:$0xff]
  %v19 = vmul.bf16 %v15, %v17
  %v20 = vmul.bf16 %v16, %v18
  %v21 = vld [vmem:[%s2] sm:$0xf]
  %v22 = vld [vmem:[%s2 + $0x4] sm:$0xf]
  %v23 = vld [vmem:[%s2 + $0x8] sm:$0xf]
  %v24 = vld [vmem:[%s2 + $0xc] sm:$0xf]
  %v25 = vld [vmem:[%s2 + $0x10] sm:$0xf]
  %v26 = vld [vmem:[%s2 + $0x14] sm:$0xf]
  %v27 = vld [vmem:[%s2 + $0x18] sm:$0xf]
  %v28 = vld [vmem:[%s2 + $0x1c] sm:$0xf]
  %v29 = vld [vmem:[%s2 + $0x20] sm:$0xf]
  %v30 = vld [vmem:[%s2 + $0x24] sm:$0xf]
  %v31 = vld [vmem:[%s2 + $0x28] sm:$0xf]
  %v32 = vld [vmem:[%s2 + $0x2c] sm:$0xf]
  %v33 = vld [vmem:[%s2 + $0x30] sm:$0xf]
  %v34 = vld [vmem:[%s2 + $0x34] sm:$0xf]
  %v35 = vld [vmem:[%s2 + $0x38] sm:$0xf]
  %v36 = vld [vmem:[%s2 + $0x3c] sm:$0xf]
  %v37 = vld [vmem:[%s2 + $0x40] sm:$0xf]
  %v38 = vld [vmem:[%s2 + $0x44] sm:$0xf]
  %v39 = vld [vmem:[%s2 + $0x48] sm:$0xf]
  %v40 = vld [vmem:[%s2 + $0x4c] sm:$0xf]
  %v41 = vld [vmem:[%s2 + $0x50] sm:$0xf]
  %v42 = vld [vmem:[%s2 + $0x54] sm:$0xf]
  %v43 = vld [vmem:[%s2 + $0x58] sm:$0xf]
  %v44 = vld [vmem:[%s2 + $0x5c] sm:$0xf]
  %v45 = vld [vmem:[%s2 + $0x60] sm:$0xf]
  %v46 = vld [vmem:[%s2 + $0x64] sm:$0xf]
  %v47 = vld [vmem:[%s2 + $0x68] sm:$0xf]
  %v48 = vld [vmem:[%s2 + $0x6c] sm:$0xf]
  %v49 = vld [vmem:[%s2 + $0x70] sm:$0xf]
  %v50 = vld [vmem:[%s2 + $0x74] sm:$0xf]
  %v51 = vld [vmem:[%s2 + $0x78] sm:$0xf]
  %v52 = vld [vmem:[%s2 + $0x7c] sm:$0xf]
  %v55 = vunpack.c.l.b16 %v19
  %v56 = vunpack.c.h.b16 %v19
  %v57 = vunpack.c.l.b16 %v20
  %v58 = vunpack.c.h.b16 %v20
  %v59 = vpack.c.b16 %v57, %v55
  %v60 = vpack.c.b16 %v58, %v56
  %v95 = vunpack.c.l.b16 %v21
  %v96 = vunpack.c.l.b16 %v22
  %v97 = vunpack.c.l.b16 %v23
  %v98 = vunpack.c.l.b16 %v24
  %v99 = vunpack.c.l.b16 %v25
  %v100 = vunpack.c.l.b16 %v26
  %v101 = vunpack.c.l.b16 %v27
  %v102 = vunpack.c.l.b16 %v28
  %v103 = vunpack.c.l.b16 %v29
  %v104 = vunpack.c.l.b16 %v30
  %v105 = vunpack.c.l.b16 %v31
  %v106 = vunpack.c.l.b16 %v32
  %v107 = vunpack.c.l.b16 %v33
  %v108 = vunpack.c.l.b16 %v34
  %v109 = vunpack.c.l.b16 %v35
  %v110 = vunpack.c.l.b16 %v36
  %v111 = vunpack.c.l.b16 %v37
  %v112 = vunpack.c.l.b16 %v38
  %v113 = vunpack.c.l.b16 %v39
  %v114 = vunpack.c.l.b16 %v40
  %v115 = vunpack.c.l.b16 %v41
  %v116 = vunpack.c.l.b16 %v42
  %v117 = vunpack.c.l.b16 %v43
  %v118 = vunpack.c.l.b16 %v44
  %v119 = vunpack.c.l.b16 %v45
  %v120 = vunpack.c.l.b16 %v46
  %v121 = vunpack.c.l.b16 %v47
  %v122 = vunpack.c.l.b16 %v48
  %v123 = vunpack.c.l.b16 %v49
  %v124 = vunpack.c.l.b16 %v50
  %v125 = vunpack.c.l.b16 %v51
  %v126 = vunpack.c.l.b16 %v52
  %v127 = vpack.c.b16 %v96, %v95
  %v128 = vpack.c.b16 %v98, %v97
  %v129 = vpack.c.b16 %v100, %v99
  %v130 = vpack.c.b16 %v102, %v101
  %v131 = vpack.c.b16 %v104, %v103
  %v132 = vpack.c.b16 %v106, %v105
  %v133 = vpack.c.b16 %v108, %v107
  %v134 = vpack.c.b16 %v110, %v109
  %v135 = vpack.c.b16 %v112, %v111
  %v136 = vpack.c.b16 %v114, %v113
  %v137 = vpack.c.b16 %v116, %v115
  %v138 = vpack.c.b16 %v118, %v117
  %v139 = vpack.c.b16 %v120, %v119
  %v140 = vpack.c.b16 %v122, %v121
  %v141 = vpack.c.b16 %v124, %v123
  %v142 = vpack.c.b16 %v126, %v125
  %159 = vmatprep.subr.bf16.mxu0 0
  %160 = vmatpush1.bf16.msra.mxu0 %v127
  %161 = vmatprep.subr.bf16.mxu0 0
  %162 = vmatpush1.bf16.msra.mxu0 %v128
  %163 = vmatprep.subr.bf16.mxu0 0
  %164 = vmatpush1.bf16.msra.mxu0 %v129
  %165 = vmatprep.subr.bf16.mxu0 0
  %166 = vmatpush1.bf16.msra.mxu0 %v130
  %167 = vmatprep.subr.bf16.mxu0 0
  %168 = vmatpush1.bf16.msra.mxu0 %v131
  %169 = vmatprep.subr.bf16.mxu0 0
  %170 = vmatpush1.bf16.msra.mxu0 %v132
  %171 = vmatprep.subr.bf16.mxu0 0
  %172 = vmatpush1.bf16.msra.mxu0 %v133
  %173 = vmatprep.subr.bf16.mxu0 0
  %174 = vmatpush1.bf16.msra.mxu0 %v134
  %175 = vmatprep.subr.bf16.mxu0 0
  %176 = vmatpush1.bf16.msra.mxu0 %v135
  %177 = vmatprep.subr.bf16.mxu0 0
  %178 = vmatpush1.bf16.msra.mxu0 %v136
  %179 = vmatprep.subr.bf16.mxu0 0
  %180 = vmatpush1.bf16.msra.mxu0 %v137
  %181 = vmatprep.subr.bf16.mxu0 0
  %182 = vmatpush1.bf16.msra.mxu0 %v138
  %183 = vmatprep.subr.bf16.mxu0 0
  %184 = vmatpush1.bf16.msra.mxu0 %v139
  %185 = vmatprep.subr.bf16.mxu0 0
  %186 = vmatpush1.bf16.msra.mxu0 %v140
  %187 = vmatprep.subr.bf16.mxu0 0
  %188 = vmatpush1.bf16.msra.mxu0 %v141
  %189 = vmatprep.subr.bf16.mxu0 0
  %190 = vmatpush1.bf16.msra.mxu0 %v142
  %191 = vmatprep.mubr.bf16.mxu0 %v60
  %192 = vmatmul.mubr.bf16.gmra.mrb[0].mxu0 %v59
  %v193 = vpop.f32.mrb[0].mxu0
  %v194 = vadd.f32 0.0, %v193
  %v195 = vpop.f32.mrb[0].mxu0
  %v196 = vpop.f32.mrb[0].mxu0
  %v197 = vadd.f32 0.0, %v196
  %v198 = vpop.f32.mrb[0].mxu0
  %199 = vdwg.mxu0
  %v200 = vxor.u32 %v194, 2147483648
  %v201 = vxor.u32 %v197, 2147483648
  %v202 = vmul.f32 %v200, 1.442695
  %v203 = vpow.pop %v202
  %v204 = vmul.f32 %v201, 1.442695
  %v205 = vpow.pop %v204
  %v206 = vadd.f32 %v203, 1.0
  %v207 = vadd.f32 %v205, 1.0
  %v208 = vrcp.pop %v206
  %v209 = vmul.f32 1.0, %v208
  %v210 = vrcp.pop %v207
  %v211 = vmul.f32 1.0, %v210
  %vm212 = vcmask 64512
  %213 = vst.msk [vmem:[%s3] sm:$0xff] %vm212, %v209
  %214 = vst.msk [vmem:[%s3 + $0x8] sm:$0xff] %vm212, %v211
  // Predicated region
  $region14: #{tpu_custom_call.1} parent=0 // pred_check
    _
  $region15: #{tpu_custom_call.1} parent=0 // pred_check_branch
    %216 = sbr.rel (0) target = $region17
  $region16: #{tpu_custom_call.1} parent=0 // pred_region
    _
  $region17: #{tpu_custom_call.1} parent=0 // pred_fallthru
    _
  // Predicated region
  $region18: #{tpu_custom_call.1} parent=0 // pred_check
    _
  $region19: #{tpu_custom_call.1} parent=0 // pred_check_branch
    %218 = sbr.rel (0) target = $region21
  $region20: #{tpu_custom_call.1} parent=0 // pred_region
    _
  $region21: #{tpu_custom_call.1} parent=0 // pred_fallthru
    _

</llo_original>
